<compile_context>
chip_gen: v7x
topology: tpu7x:2x2x1
jax: 0.10.0
libtpu: 0.0.40
codegen_flags: <defaults>
</compile_context>

<pallas_src>
import functools

import jax
import jax.numpy as jnp
from jax.experimental import pallas as pl
from jax.experimental.pallas import tpu as pltpu


# ----------------------------------------------------------------------------
# Hot kernel: per-(sequence-tile, batch)  LayerNorm + modulate + final Linear
# ----------------------------------------------------------------------------
def final_layer_kernel(x_ref, shift_ref, scale1_ref, w_lin_ref, b_lin_ref,
                       o_ref, *, eps):
    x = x_ref[0].astype(jnp.float32)            # [tn, C]
    shift = shift_ref[0].astype(jnp.float32)    # [1, C]
    scale1 = scale1_ref[0].astype(jnp.float32)  # [1, C]  (already 1 + scale)

    # LayerNorm(elementwise_affine=False), biased variance, f32.
    mean = jnp.mean(x, axis=-1, keepdims=True)
    xc = x - mean
    var = jnp.mean(xc * xc, axis=-1, keepdims=True)
    xn = xc * jax.lax.rsqrt(var + jnp.float32(eps))

    # modulate (the +1 was folded into scale1 in the wrapper)
    h = xn * scale1 + shift                     # [tn, C]

    # Final linear: bf16 inputs on the MXU, f32 accumulation, f32 bias.
    y = jnp.dot(h.astype(w_lin_ref.dtype), w_lin_ref[...],
                preferred_element_type=jnp.float32)
    y = y + b_lin_ref[...].astype(jnp.float32)  # [tn, D_pad]

    o_ref[0] = y.astype(o_ref.dtype)            # lane-dense (D_pad % 128 == 0)


# ----------------------------------------------------------------------------
# Tile selection: largest divisor of N <= target that keeps (8,128) tiling legal
# ----------------------------------------------------------------------------
def _choose_seq_tile(N, target):
    if N <= target:
        return N
    for d in range(min(target, N), 0, -1):
        if N % d == 0 and d % 8 == 0:
            return d
    # No divisor of N <= target is a multiple of 8; fall back to the whole
    # sequence (block dim equal to the full array dim is always legal).
    return N


# ----------------------------------------------------------------------------
# Wrapper
# ----------------------------------------------------------------------------
def final_layer(x, c, params, *, tile_n=512, eps=1e-6):
    B, N, C = x.shape
    D = params["w_lin"].shape[1]

    # --- adaLN (tiny: [B,C] x [C,2C]) in plain JAX; XLA fuses it ------------
    c2 = c.reshape(B, C).astype(jnp.float32)
    c_act = c2 * jax.nn.sigmoid(c2)                               # SiLU, f32
    ada = jnp.dot(c_act.astype(params["w_ada"].dtype), params["w_ada"],
                  preferred_element_type=jnp.float32)
    ada = ada + params["b_ada"].astype(jnp.float32)               # [B, 2C]
    shift = ada[:, None, :C]                                      # [B, 1, C]
    scale1 = 1.0 + ada[:, None, C:]                               # [B, 1, C]

    # --- lane-dense output: pad final-linear weights to a multiple of 128 ---
    D_pad = max(128, ((D + 127) // 128) * 128)
    if D_pad != D:
        w_lin = jnp.pad(params["w_lin"], ((0, 0), (0, D_pad - D)))
        b_lin = jnp.pad(params["b_lin"], ((0, 0), (0, D_pad - D)))
    else:
        w_lin, b_lin = params["w_lin"], params["b_lin"]

    # --- sequence tiling -----------------------------------------------------
    tn = _choose_seq_tile(N, tile_n)
    grid = (N // tn, B)   # large parallel axis first (v7x TC sharding)

    kernel = functools.partial(final_layer_kernel, eps=eps)
    out_pad = pl.pallas_call(
        kernel,
        out_shape=jax.ShapeDtypeStruct((B, N, D_pad), x.dtype),
        grid_spec=pltpu.PrefetchScalarGridSpec(
            num_scalar_prefetch=0,
            grid=grid,
            in_specs=[
                pl.BlockSpec((1, tn, C), lambda n, b: (b, n, 0)),     # x tile
                pl.BlockSpec((1, 1, C), lambda n, b: (b, 0, 0)),      # shift[b]
                pl.BlockSpec((1, 1, C), lambda n, b: (b, 0, 0)),      # 1+scale[b]
                pl.BlockSpec((C, D_pad), lambda n, b: (0, 0)),        # w_lin (resident)
                pl.BlockSpec((1, D_pad), lambda n, b: (0, 0)),        # b_lin (resident)
            ],
            out_specs=pl.BlockSpec((1, tn, D_pad), lambda n, b: (b, n, 0)),
        ),
        compiler_params=pltpu.CompilerParams(
            dimension_semantics=("parallel", "parallel"),
            # ~75% of v7x's 64 MiB/TC; raise when sweeping tn >= 2048 on
            # v5e/v6e (128 MiB physical VMEM).
            vmem_limit_bytes=48 * 1024 * 1024,
        ),
    )(x, shift, scale1, w_lin, b_lin)

    return out_pad[..., :D] if D_pad != D else out_pad


# ----------------------------------------------------------------------------
# Pure-JAX reference (mirrors the bf16-input / f32-accumulate matmuls)
# ----------------------------------------------------------------------------
def ref_final_layer(x, c, params, *, eps=1e-6):
    B, N, C = x.shape
    c2 = c.reshape(B, C).astype(jnp.float32)
    c_act = c2 * jax.nn.sigmoid(c2)
    ada = jnp.dot(c_act.astype(params["w_ada"].dtype), params["w_ada"],
                  preferred_element_type=jnp.float32) + params["b_ada"]
    shift = ada[:, None, :C]
    scale = ada[:, None, C:]

    xf = x.astype(jnp.float32)
    mean = xf.mean(-1, keepdims=True)
    xc = xf - mean
    var = (xc * xc).mean(-1, keepdims=True)
    xn = xc * jax.lax.rsqrt(var + jnp.float32(eps))
    h = xn * (1.0 + scale) + shift

    y = jnp.dot(h.astype(params["w_lin"].dtype), params["w_lin"],
                preferred_element_type=jnp.float32) + params["b_lin"]
    return y.astype(x.dtype)


def init_params(key, hidden, patch_size, out_channels):
    D = patch_size * patch_size * out_channels
    k1, k2 = jax.random.split(key)
    std = 0.02
    return {
        # Weights stored bf16 (MXU-native); biases kept f32 (added to f32 accum).
        # NOTE: this intentionally deviates from a pure-f32 PyTorch FinalLayer;
        # the reference above mirrors the same mixed precision.
        "w_ada": (std * jax.random.normal(k1, (hidden, 2 * hidden),
                                          jnp.float32)).astype(jnp.bfloat16),
        "b_ada": jnp.zeros((1, 2 * hidden), jnp.float32),
        "w_lin": (std * jax.random.normal(k2, (hidden, D),
                                          jnp.float32)).astype(jnp.bfloat16),
        "b_lin": 0.01 * jnp.ones((1, D), jnp.float32),
    }


if __name__ == "__main__":
    B, N, C = 2, 256, 32          # batch, sequence, hidden
    patch_size, out_channels = 2, 4
    D = patch_size * patch_size * out_channels

    key = jax.random.PRNGKey(0)
    kx, kc, kp = jax.random.split(key, 3)
    x = jax.random.normal(kx, (B, N, C), jnp.float32)
    c = jax.random.normal(kc, (B, 1, C), jnp.float32)
    params = init_params(kp, C, patch_size, out_channels)

    out = final_layer(x, c, params, tile_n=512)
    out = jax.block_until_ready(out)

    ref = ref_final_layer(x, c, params)
    assert out.shape == (B, N, D), out.shape
    max_err = float(jnp.max(jnp.abs(out - ref)))
    assert jnp.allclose(out, ref, atol=2e-3, rtol=2e-3), max_err

    print("KERNEL_OK")
</pallas_src>

<mosaic_0001>
module attributes {stable_mosaic.version = 11 : i64} {
  func.func @final_layer_kernel(%arg0: i32, %arg1: i32, %arg2: memref<1x256x32xf32, #tpu.memory_space<vmem>>, %arg3: memref<1x1x32xf32, #tpu.memory_space<vmem>>, %arg4: memref<1x1x32xf32, #tpu.memory_space<vmem>>, %arg5: memref<32x128xbf16, #tpu.memory_space<vmem>>, %arg6: memref<1x128xf32, #tpu.memory_space<vmem>>, %arg7: memref<1x256x128xf32, #tpu.memory_space<vmem>>) attributes {dimension_semantics = [#tpu.dimension_semantics<parallel>, #tpu.dimension_semantics<parallel>], iteration_bounds = array<i64: 1, 2>, scalar_prefetch = 0 : i64, scratch_operands = 0 : i64, tpu.core_type = #tpu.core_type<tc>, window_params = [{transform_indices = @transform_0, window_bounds = array<i64: 1, 256, 32>}, {transform_indices = @transform_1, window_bounds = array<i64: 1, 1, 32>}, {transform_indices = @transform_2, window_bounds = array<i64: 1, 1, 32>}, {pipeline_mode = #tpu.pipeline_mode<synchronous>, transform_indices = @transform_3, window_bounds = array<i64: 32, 128>}, {pipeline_mode = #tpu.pipeline_mode<synchronous>, transform_indices = @transform_4, window_bounds = array<i64: 1, 128>}, {transform_indices = @transform_5, window_bounds = array<i64: 1, 256, 128>}]} {
    %c0 = arith.constant 0 : index
    %c0_0 = arith.constant 0 : index
    %c0_1 = arith.constant 0 : index
    %0 = vector.load %arg2[%c0, %c0_0, %c0_1] : memref<1x256x32xf32, #tpu.memory_space<vmem>>, vector<1x256x32xf32>
    %1 = vector.shape_cast %0 : vector<1x256x32xf32> to vector<256x32xf32>
    %c0_2 = arith.constant 0 : index
    %c0_3 = arith.constant 0 : index
    %c0_4 = arith.constant 0 : index
    %2 = vector.load %arg3[%c0_2, %c0_3, %c0_4] : memref<1x1x32xf32, #tpu.memory_space<vmem>>, vector<1x1x32xf32>
    %3 = vector.shape_cast %2 : vector<1x1x32xf32> to vector<1x32xf32>
    %c0_5 = arith.constant 0 : index
    %c0_6 = arith.constant 0 : index
    %c0_7 = arith.constant 0 : index
    %4 = vector.load %arg4[%c0_5, %c0_6, %c0_7] : memref<1x1x32xf32, #tpu.memory_space<vmem>>, vector<1x1x32xf32>
    %5 = vector.shape_cast %4 : vector<1x1x32xf32> to vector<1x32xf32>
    %cst = arith.constant dense<0.000000e+00> : vector<256xf32>
    %6 = vector.multi_reduction <add>, %1, %cst [1] : vector<256x32xf32> to vector<256xf32>
    %7 = vector.shape_cast %6 : vector<256xf32> to vector<256x1xf32>
    %cst_8 = arith.constant 3.200000e+01 : f32
    %8 = vector.broadcast %cst_8 : f32 to vector<256x1xf32>
    %9 = arith.divf %7, %8 : vector<256x1xf32>
    %10 = vector.broadcast %9 : vector<256x1xf32> to vector<256x32xf32>
    %11 = arith.subf %1, %10 : vector<256x32xf32>
    %12 = arith.mulf %11, %11 : vector<256x32xf32>
    %cst_9 = arith.constant dense<0.000000e+00> : vector<256xf32>
    %13 = vector.multi_reduction <add>, %12, %cst_9 [1] : vector<256x32xf32> to vector<256xf32>
    %14 = vector.shape_cast %13 : vector<256xf32> to vector<256x1xf32>
    %cst_10 = arith.constant 3.200000e+01 : f32
    %15 = vector.broadcast %cst_10 : f32 to vector<256x1xf32>
    %16 = arith.divf %14, %15 : vector<256x1xf32>
    %cst_11 = arith.constant 9.99999997E-7 : f32
    %17 = vector.broadcast %cst_11 : f32 to vector<256x1xf32>
    %18 = arith.addf %16, %17 : vector<256x1xf32>
    %19 = math.rsqrt %18 : vector<256x1xf32>
    %20 = vector.broadcast %19 : vector<256x1xf32> to vector<256x32xf32>
    %21 = arith.mulf %11, %20 : vector<256x32xf32>
    %22 = vector.broadcast %5 : vector<1x32xf32> to vector<256x32xf32>
    %23 = arith.mulf %21, %22 : vector<256x32xf32>
    %24 = vector.broadcast %3 : vector<1x32xf32> to vector<256x32xf32>
    %25 = arith.addf %23, %24 : vector<256x32xf32>
    %26 = arith.truncf %25 : vector<256x32xf32> to vector<256x32xbf16>
    %c0_12 = arith.constant 0 : index
    %c0_13 = arith.constant 0 : index
    %27 = vector.load %arg5[%c0_12, %c0_13] : memref<32x128xbf16, #tpu.memory_space<vmem>>, vector<32x128xbf16>
    %cst_14 = arith.constant dense<0.000000e+00> : vector<256x128xf32>
    %28 = tpu.matmul %26, %27, %cst_14 {dimension_numbers = #tpu.dot_dimension_numbers<[1], [0], [0], [1], [0, 0, 1, 1], [], []>} : vector<256x32xbf16>, vector<32x128xbf16>, vector<256x128xf32> -> vector<256x128xf32>
    %c0_15 = arith.constant 0 : index
    %c0_16 = arith.constant 0 : index
    %29 = vector.load %arg6[%c0_15, %c0_16] : memref<1x128xf32, #tpu.memory_space<vmem>>, vector<1x128xf32>
    %30 = vector.broadcast %29 : vector<1x128xf32> to vector<256x128xf32>
    %31 = arith.addf %28, %30 : vector<256x128xf32>
    %c0_17 = arith.constant 0 : index
    %c0_18 = arith.constant 0 : index
    %c0_19 = arith.constant 0 : index
    %32 = vector.load %arg7[%c0_17, %c0_18, %c0_19] : memref<1x256x128xf32, #tpu.memory_space<vmem>>, vector<1x256x128xf32>
    %33 = vector.shape_cast %32 : vector<1x256x128xf32> to vector<256x128xf32>
    %34 = vector.shape_cast %31 : vector<256x128xf32> to vector<1x256x128xf32>
    tpu.vector_store %arg7[%c0_17, %c0_18, %c0_19], %34 {strides = array<i32>} : memref<1x256x128xf32, #tpu.memory_space<vmem>>, vector<1x256x128xf32>,
    return
  }
  func.func @transform_0(%arg0: i32, %arg1: i32) -> (i32, i32, i32) {
    %c0_i32 = arith.constant 0 : i32
    %c0_i32_0 = arith.constant 0 : i32
    return %arg1, %arg0, %c0_i32 : i32, i32, i32
  }
  func.func @transform_1(%arg0: i32, %arg1: i32) -> (i32, i32, i32) {
    %c0_i32 = arith.constant 0 : i32
    %c0_i32_0 = arith.constant 0 : i32
    %c0_i32_1 = arith.constant 0 : i32
    return %arg1, %c0_i32, %c0_i32_0 : i32, i32, i32
  }
  func.func @transform_2(%arg0: i32, %arg1: i32) -> (i32, i32, i32) {
    %c0_i32 = arith.constant 0 : i32
    %c0_i32_0 = arith.constant 0 : i32
    %c0_i32_1 = arith.constant 0 : i32
    return %arg1, %c0_i32, %c0_i32_0 : i32, i32, i32
  }
  func.func @transform_3(%arg0: i32, %arg1: i32) -> (i32, i32) {
    %c0_i32 = arith.constant 0 : i32
    %c0_i32_0 = arith.constant 0 : i32
    %c0_i32_1 = arith.constant 0 : i32
    return %c0_i32, %c0_i32_0 : i32, i32
  }
  func.func @transform_4(%arg0: i32, %arg1: i32) -> (i32, i32) {
    %c0_i32 = arith.constant 0 : i32
    %c0_i32_0 = arith.constant 0 : i32
    %c0_i32_1 = arith.constant 0 : i32
    return %c0_i32, %c0_i32_0 : i32, i32
  }
  func.func @transform_5(%arg0: i32, %arg1: i32) -> (i32, i32, i32) {
    %c0_i32 = arith.constant 0 : i32
    %c0_i32_0 = arith.constant 0 : i32
    return %arg1, %arg0, %c0_i32 : i32, i32, i32
  }
}

</mosaic_0001>

<llo_original>
// kernel: tpu_custom_call.1
$region0: #{tpu_custom_call.1}
  #allocation0 [shape = 'u32[]', space=smem, size = 0x4, offset = 0x4, fixed_abs, tag = 'smem constant byte address 0x4 - core index']
  #allocation1 [shape = 'u32[144,128]{1,0:T(1,128)}', space=vmem, size = 0x12000, scoped, tag = 'internal scratch']
  %s0 = inlined_call_operand.vmem [shape: f32[2,256,32], index: 0, kind: input, shape index: {}]
  %s1 = inlined_call_operand.vmem [shape: f32[2,1,32], index: 1, kind: input, shape index: {}]
  %s2 = inlined_call_operand.vmem [shape: f32[2,1,32], index: 2, kind: input, shape index: {}]
  %s3 = inlined_call_operand.vmem [shape: bf16[32,128], index: 3, kind: input, shape index: {}]
  %s4 = inlined_call_operand.vmem [shape: f32[1,128], index: 4, kind: input, shape index: {}]
  %s5 = inlined_call_operand.hbm [shape: f32[2,256,128], index: 5, kind: output, shape index: {}]
  %s6 = sld [smem:[#allocation0]]
  $region53: #{tpu_custom_call.1} parent=0
    _
  %s8 = ssub.s32 1, %s6
  %s9 = scalar_select 0, %s8, %s6
  $region1: #{tpu_custom_call.1} parent=0
    #allocation2 [shape = 'u8[262144]{0}', space=vmem, size = 0x40000, scoped, tag = 'output window, operand 0']
    #allocation3 [shape = 's32[2]{0}', space=sflag, size = 0x8, scoped, tag = 'scoped memory for tpu_custom_call.1']
    %10 = vsyncpa [#allocation3], 0
    %s11 = scalar_lea.sflag [#allocation3], 1
    %12 = vsyncpa %s11, 0
    loop: start=0, step=1, limit=4
    $region2: #{tpu_custom_call.1} parent=1 // loop_pre_header
      _
    $region3: #{tpu_custom_call.1} parent=1 // loop_header
      %s14 = sphi 0, %s18
      %p15 = scmp.ge.s32.totalorder %s14, 4
      %s21 = sphi 0, %s33
      %s22 = sphi 0, %s29
      %s23 = sphi 0, %s21
      %s24 = sphi 0, %s22
      %s25 = sphi 0, %s23
      %s26 = sphi 0, %s24
      %s38 = sphi 0, %s40
      %s41 = sphi 0, %s38
      %s42 = sphi 0, %s41
      %s58 = sphi 0, %s42
      %s64 = sphi 0, %s66
      %s67 = sphi 0, %s64
      %s68 = sphi 0, %s67
      %s84 = sphi 0, %s68
      %s90 = sphi 0, %s92
      %s93 = sphi 0, %s90
      %s94 = sphi 0, %s93
      %s110 = sphi 0, %s94
      %s114 = sphi 0, %s114
      %s116 = sphi 0, %s114
      %s117 = sphi 0, %s116
      %s131 = sphi 0, %s117
      %s135 = sphi 0, %s135
      %s137 = sphi 0, %s135
      %s138 = sphi 0, %s137
      %s152 = sphi 0, %s138
      %s160 = sphi 0, %s162
      %s163 = sphi 0, %s160
      %s164 = sphi 0, %s163
      %s180 = sphi 0, %s164
    $region4: #{tpu_custom_call.1} parent=1 // loop_header_branch
      %17 = sbr.rel (%p15) target = $region8
    $region5: #{tpu_custom_call.1} parent=1 // loop_body
      %s19 = ssub.s32 %s14, 1
      %s20 = ssub.s32 %s14, 2
      %s27 = sadd.s32 1, %s22
      %p28 = scmp.ge.s32.totalorder %s27, 2
      %s29 = scalar_select %p28, 0, %s27
      %s30 = sadd.s32 1, %s21
      %s31 = scalar_select %p28, %s30, %s21
      %p32 = scmp.ge.s32.totalorder %s31, 1
      %s33 = scalar_select %p32, 0, %s31
      %s34 = ssub.s32 %s22, %s29
      %s35 = ssub.s32 %s21, %s33
      %s36 = sor.u32 %s34, %s35
      %p37 = scmp.eq.s32.totalorder %s36, 0
      %s39 = sadd.s32 %s38, 1
      %s40 = scalar_select %p37, %s38, %s39
      %p43 = pneg %p37
      %p44 = scmp.eq.s32.totalorder %s14, 1
      %p45 = por %p43, %p44
      %p46 = scmp.ne.s32.totalorder %s38, %s41
      %p47 = scmp.eq.s32.totalorder %s14, 0
      %p48 = por %p46, %p47
      %p49 = scmp.ne.s32.totalorder %s38, %s41
      %p50 = scmp.eq.s32.totalorder %s19, 1
      %p51 = por %p49, %p50
      %p52 = scmp.ne.s32.totalorder %s41, %s42
      %p53 = scmp.eq.s32.totalorder %s19, 0
      %p54 = por %p52, %p53
      %p55 = scmp.ne.s32.totalorder %s41, %s42
      %p56 = scmp.eq.s32.totalorder %s20, 1
      %p57 = por %p55, %p56
      %p59 = scmp.ne.s32.totalorder %s42, %s58
      %p60 = scmp.eq.s32.totalorder %s20, 0
      %p61 = por %p59, %p60
      %s62 = ssub.s32 %s22, %s29
      %p63 = scmp.eq.s32.totalorder %s62, 0
      %s65 = sadd.s32 %s64, 1
      %s66 = scalar_select %p63, %s64, %s65
      %p69 = pneg %p63
      %p70 = scmp.eq.s32.totalorder %s14, 1
      %p71 = por %p69, %p70
      %p72 = scmp.ne.s32.totalorder %s64, %s67
      %p73 = scmp.eq.s32.totalorder %s14, 0
      %p74 = por %p72, %p73
      %p75 = scmp.ne.s32.totalorder %s64, %s67
      %p76 = scmp.eq.s32.totalorder %s19, 1
      %p77 = por %p75, %p76
      %p78 = scmp.ne.s32.totalorder %s67, %s68
      %p79 = scmp.eq.s32.totalorder %s19, 0
      %p80 = por %p78, %p79
      %p81 = scmp.ne.s32.totalorder %s67, %s68
      %p82 = scmp.eq.s32.totalorder %s20, 1
      %p83 = por %p81, %p82
      %p85 = scmp.ne.s32.totalorder %s68, %s84
      %p86 = scmp.eq.s32.totalorder %s20, 0
      %p87 = por %p85, %p86
      %s88 = ssub.s32 %s22, %s29
      %p89 = scmp.eq.s32.totalorder %s88, 0
      %s91 = sadd.s32 %s90, 1
      %s92 = scalar_select %p89, %s90, %s91
      %p95 = pneg %p89
      %p96 = scmp.eq.s32.totalorder %s14, 1
      %p97 = por %p95, %p96
      %p98 = scmp.ne.s32.totalorder %s90, %s93
      %p99 = scmp.eq.s32.totalorder %s14, 0
      %p100 = por %p98, %p99
      %p101 = scmp.ne.s32.totalorder %s90, %s93
      %p102 = scmp.eq.s32.totalorder %s19, 1
      %p103 = por %p101, %p102
      %p104 = scmp.ne.s32.totalorder %s93, %s94
      %p105 = scmp.eq.s32.totalorder %s19, 0
      %p106 = por %p104, %p105
      %p107 = scmp.ne.s32.totalorder %s93, %s94
      %p108 = scmp.eq.s32.totalorder %s20, 1
      %p109 = por %p107, %p108
      %p111 = scmp.ne.s32.totalorder %s94, %s110
      %p112 = scmp.eq.s32.totalorder %s20, 0
      %p113 = por %p111, %p112
      %s115 = sadd.s32 %s114, 1
      %p118 = scmp.eq.s32.totalorder %s14, 1
      %p119 = scmp.ne.s32.totalorder %s114, %s116
      %p120 = scmp.eq.s32.totalorder %s14, 0
      %p121 = por %p119, %p120
      %p122 = scmp.ne.s32.totalorder %s114, %s116
      %p123 = scmp.eq.s32.totalorder %s19, 1
      %p124 = por %p122, %p123
      %p125 = scmp.ne.s32.totalorder %s116, %s117
      %p126 = scmp.eq.s32.totalorder %s19, 0
      %p127 = por %p125, %p126
      %p128 = scmp.ne.s32.totalorder %s116, %s117
      %p129 = scmp.eq.s32.totalorder %s20, 1
      %p130 = por %p128, %p129
      %p132 = scmp.ne.s32.totalorder %s117, %s131
      %p133 = scmp.eq.s32.totalorder %s20, 0
      %p134 = por %p132, %p133
      %s136 = sadd.s32 %s135, 1
      %p139 = scmp.eq.s32.totalorder %s14, 1
      %p140 = scmp.ne.s32.totalorder %s135, %s137
      %p141 = scmp.eq.s32.totalorder %s14, 0
      %p142 = por %p140, %p141
      %p143 = scmp.ne.s32.totalorder %s135, %s137
      %p144 = scmp.eq.s32.totalorder %s19, 1
      %p145 = por %p143, %p144
      %p146 = scmp.ne.s32.totalorder %s137, %s138
      %p147 = scmp.eq.s32.totalorder %s19, 0
      %p148 = por %p146, %p147
      %p149 = scmp.ne.s32.totalorder %s137, %s138
      %p150 = scmp.eq.s32.totalorder %s20, 1
      %p151 = por %p149, %p150
      %p153 = scmp.ne.s32.totalorder %s138, %s152
      %p154 = scmp.eq.s32.totalorder %s20, 0
      %p155 = por %p153, %p154
      %s156 = ssub.s32 %s22, %s29
      %s157 = ssub.s32 %s21, %s33
      %s158 = sor.u32 %s156, %s157
      %p159 = scmp.eq.s32.totalorder %s158, 0
      %s161 = sadd.s32 %s160, 1
      %s162 = scalar_select %p159, %s160, %s161
      %p165 = pneg %p159
      %p166 = scmp.eq.s32.totalorder %s14, 1
      %p167 = por %p165, %p166
      %p168 = scmp.ne.s32.totalorder %s160, %s163
      %p169 = scmp.eq.s32.totalorder %s14, 0
      %p170 = por %p168, %p169
      %p171 = scmp.ne.s32.totalorder %s160, %s163
      %p172 = scmp.eq.s32.totalorder %s19, 1
      %p173 = por %p171, %p172
      %p174 = scmp.ne.s32.totalorder %s163, %s164
      %p175 = scmp.eq.s32.totalorder %s19, 0
      %p176 = por %p174, %p175
      %p177 = scmp.ne.s32.totalorder %s163, %s164
      %p178 = scmp.eq.s32.totalorder %s20, 1
      %p179 = por %p177, %p178
      %p181 = scmp.ne.s32.totalorder %s164, %s180
      %p182 = scmp.eq.s32.totalorder %s20, 0
      %p183 = por %p181, %p182
      %p184 = scmp.le.s32.totalorder 1, %s14
      %p185 = scmp.lt.s32.totalorder %s14, 3
      %p186 = pnand %p184, %p185
      %p187 = pneg %p186
      // Predicated region
      $region9: #{tpu_custom_call.1} parent=5 // pred_check
        _
      $region10: #{tpu_custom_call.1} parent=5 // pred_check_branch
        %189 = sbr.rel (%p186) target = $region12
      $region11: #{tpu_custom_call.1} parent=5 // pred_region
        %s190 = ssub.s32 %s14, 1
        // Predicated region
        $region13: #{tpu_custom_call.1} parent=11 // pred_check
          %p191 = pneg %p127
        $region14: #{tpu_custom_call.1} parent=11 // pred_check_branch
          %193 = sbr.rel (%p191) target = $region16
        $region15: #{tpu_custom_call.1} parent=11 // pred_region
          _
        $region16: #{tpu_custom_call.1} parent=11 // pred_fallthru
          _
        // Predicated region
        $region17: #{tpu_custom_call.1} parent=11 // pred_check
          %p194 = pneg %p148
        $region18: #{tpu_custom_call.1} parent=11 // pred_check_branch
          %196 = sbr.rel (%p194) target = $region20
        $region19: #{tpu_custom_call.1} parent=11 // pred_region
          _
        $region20: #{tpu_custom_call.1} parent=11 // pred_fallthru
          _
      $region12: #{tpu_custom_call.1} parent=5 // pred_fallthru
        _
      %p197 = scmp.lt.s32.totalorder %s14, 2
      // Predicated region
      $region21: #{tpu_custom_call.1} parent=5 // pred_check
        %p198 = pneg %p197
      $region22: #{tpu_custom_call.1} parent=5 // pred_check_branch
        %200 = sbr.rel (%p198) target = $region24
      $region23: #{tpu_custom_call.1} parent=5 // pred_region
        // Predicated region
        $region25: #{tpu_custom_call.1} parent=23 // pred_check
          %p201 = pneg %p48
        $region26: #{tpu_custom_call.1} parent=23 // pred_check_branch
          %203 = sbr.rel (%p201) target = $region28
        $region27: #{tpu_custom_call.1} parent=23 // pred_region
          %s204 = smul.u32 32, %s21
          %p205 = scmp.lt.s32.totalorder %s22, 1
          %s206 = scalar_select %p205, %s22, 1
          %p207 = scmp.lt.s32.totalorder %s204, 31
          %s208 = scalar_select %p207, %s204, 31
          %s209 = smul.addr %s206, 32
          %s210 = sadd.s32 %s208, %s209
          %s211 = smul.addr %s210, 8
          %s212 = scalar_lea.vmem %s0, %s211
          %s213 = smul.u32 32, %s21
        $region28: #{tpu_custom_call.1} parent=23 // pred_fallthru
          _
        // Predicated region
        $region29: #{tpu_custom_call.1} parent=23 // pred_check
          %p214 = pneg %p74
        $region30: #{tpu_custom_call.1} parent=23 // pred_check_branch
          %216 = sbr.rel (%p214) target = $region32
        $region31: #{tpu_custom_call.1} parent=23 // pred_region
          %p217 = scmp.lt.s32.totalorder %s22, 1
          %s218 = scalar_select %p217, %s22, 1
          %s219 = scalar_lea.vmem %s1, %s218
        $region32: #{tpu_custom_call.1} parent=23 // pred_fallthru
          _
        // Predicated region
        $region33: #{tpu_custom_call.1} parent=23 // pred_check
          %p220 = pneg %p100
        $region34: #{tpu_custom_call.1} parent=23 // pred_check_branch
          %222 = sbr.rel (%p220) target = $region36
        $region35: #{tpu_custom_call.1} parent=23 // pred_region
          %p223 = scmp.lt.s32.totalorder %s22, 1
          %s224 = scalar_select %p223, %s22, 1
          %s225 = scalar_lea.vmem %s2, %s224
        $region36: #{tpu_custom_call.1} parent=23 // pred_fallthru
          _
      $region24: #{tpu_custom_call.1} parent=5 // pred_fallthru
        _
      %p226 = scmp.le.s32.totalorder 1, %s14
      %p227 = scmp.lt.s32.totalorder %s14, 3
      %p228 = pnand %p226, %p227
      %p229 = pneg %p228
      // Predicated region
      $region37: #{tpu_custom_call.1} parent=5 // pred_check
        _
      $region38: #{tpu_custom_call.1} parent=5 // pred_check_branch
        %231 = sbr.rel (%p228) target = $region40
      $region39: #{tpu_custom_call.1} parent=5 // pred_region
        %s232 = ssub.s32 %s14, 1
        %s233 = smul.u32 32, %s23
        %p234 = scmp.lt.s32.totalorder %s24, 1
        %s235 = scalar_select %p234, %s24, 1
        %p236 = scmp.lt.s32.totalorder %s233, 31
        %s237 = scalar_select %p236, %s233, 31
        %s238 = smul.addr %s235, 32
        %s239 = sadd.s32 %s237, %s238
        %s240 = smul.addr %s239, 8
        %s241 = scalar_lea.vmem %s0, %s240
        %p242 = pneg %p54
        %p243 = pneg %p51
        %p244 = scmp.lt.s32.totalorder %s24, 1
        %s245 = scalar_select %p244, %s24, 1
        %s246 = scalar_lea.vmem %s1, %s245
        %p247 = pneg %p80
        %p248 = pneg %p77
        %p249 = scmp.lt.s32.totalorder %s24, 1
        %s250 = scalar_select %p249, %s24, 1
        %s251 = scalar_lea.vmem %s2, %s250
        %p252 = pneg %p106
        %p253 = pneg %p103
        %p254 = pneg %p127
        %p255 = pneg %p124
        %p256 = pneg %p148
        %p257 = pneg %p145
        %p258 = pneg %p176
        %p259 = pneg %p173
        %s260 = sand.u32 %s163, 1
        %s261 = scalar_lea.sflag [#allocation3], %s260
        %s262 = sand.u32 %s163, 1
        %s263 = smul.addr %s262, 256
        %s264 = scalar_lea.vmem [#allocation2], %s263
        %s265 = smul.u32 32, %s23
        %p266 = scmp.lt.s32.totalorder %s24, 1
        %s267 = scalar_select %p266, %s24, 1
        %p268 = scmp.lt.s32.totalorder %s265, 31
        %s269 = scalar_select %p268, %s265, 31
        %s270 = smul.addr %s267, 32
        %s271 = sadd.s32 %s269, %s270
        %s272 = smul.addr %s271, 8
        %s273 = scalar_lea.vmem %s0, %s272
        %s274 = smul.u32 32, %s23
        %p275 = scmp.lt.s32.totalorder %s24, 1
        %s276 = scalar_select %p275, %s24, 1
        %s277 = scalar_lea.vmem %s1, %s276
        %p278 = scmp.lt.s32.totalorder %s24, 1
        %s279 = scalar_select %p278, %s24, 1
        %s280 = scalar_lea.vmem %s2, %s279
        %s281 = smul.u32 32, %s23
        %v283 = vld [vmem:[%s273] sm:$0xff]
        %v284 = vld [vmem:[%s273 + $0x8] sm:$0xff]
        %v285 = vld [vmem:[%s273 + $0x10] sm:$0xff]
        %v286 = vld [vmem:[%s273 + $0x18] sm:$0xff]
        %v287 = vld [vmem:[%s273 + $0x20] sm:$0xff]
        %v288 = vld [vmem:[%s273 + $0x28] sm:$0xff]
        %v289 = vld [vmem:[%s273 + $0x30] sm:$0xff]
        %v290 = vld [vmem:[%s273 + $0x38] sm:$0xff]
        %v291 = vld [vmem:[%s273 + $0x40] sm:$0xff]
        %v292 = vld [vmem:[%s273 + $0x48] sm:$0xff]
        %v293 = vld [vmem:[%s273 + $0x50] sm:$0xff]
        %v294 = vld [vmem:[%s273 + $0x58] sm:$0xff]
        %v295 = vld [vmem:[%s273 + $0x60] sm:$0xff]
        %v296 = vld [vmem:[%s273 + $0x68] sm:$0xff]
        %v297 = vld [vmem:[%s273 + $0x70] sm:$0xff]
        %v298 = vld [vmem:[%s273 + $0x78] sm:$0xff]
        %v299 = vld [vmem:[%s273 + $0x80] sm:$0xff]
        %v300 = vld [vmem:[%s273 + $0x88] sm:$0xff]
        %v301 = vld [vmem:[%s273 + $0x90] sm:$0xff]
        %v302 = vld [vmem:[%s273 + $0x98] sm:$0xff]
        %v303 = vld [vmem:[%s273 + $0xa0] sm:$0xff]
        %v304 = vld [vmem:[%s273 + $0xa8] sm:$0xff]
        %v305 = vld [vmem:[%s273 + $0xb0] sm:$0xff]
        %v306 = vld [vmem:[%s273 + $0xb8] sm:$0xff]
        %v307 = vld [vmem:[%s273 + $0xc0] sm:$0xff]
        %v308 = vld [vmem:[%s273 + $0xc8] sm:$0xff]
        %v309 = vld [vmem:[%s273 + $0xd0] sm:$0xff]
        %v310 = vld [vmem:[%s273 + $0xd8] sm:$0xff]
        %v311 = vld [vmem:[%s273 + $0xe0] sm:$0xff]
        %v312 = vld [vmem:[%s273 + $0xe8] sm:$0xff]
        %v313 = vld [vmem:[%s273 + $0xf0] sm:$0xff]
        %v314 = vld [vmem:[%s273 + $0xf8] sm:$0xff]
        %v315 = vld [vmem:[%s277] sm:$0x1]
        %v316 = vld [vmem:[%s280] sm:$0x1]
        %vm317 = vcmask 261120
        %v318 = vsel %vm317, %v283, 0.0
        %319 = vadd.xlane.f32.xlu0 %v318
        %v320 = vpop.xlane.xlu0 %319
        %v321 = vsel %vm317, %v284, 0.0
        %322 = vadd.xlane.f32.xlu0 %v321
        %v323 = vpop.xlane.xlu0 %322
        %v324 = vsel %vm317, %v285, 0.0
        %325 = vadd.xlane.f32.xlu0 %v324
        %v326 = vpop.xlane.xlu0 %325
        %v327 = vsel %vm317, %v286, 0.0
        %328 = vadd.xlane.f32.xlu0 %v327
        %v329 = vpop.xlane.xlu0 %328
        %v330 = vsel %vm317, %v287, 0.0
        %331 = vadd.xlane.f32.xlu0 %v330
        %v332 = vpop.xlane.xlu0 %331
        %v333 = vsel %vm317, %v288, 0.0
        %334 = vadd.xlane.f32.xlu0 %v333
        %v335 = vpop.xlane.xlu0 %334
        %v336 = vsel %vm317, %v289, 0.0
        %337 = vadd.xlane.f32.xlu0 %v336
        %v338 = vpop.xlane.xlu0 %337
        %v339 = vsel %vm317, %v290, 0.0
        %340 = vadd.xlane.f32.xlu0 %v339
        %v341 = vpop.xlane.xlu0 %340
        %v342 = vsel %vm317, %v291, 0.0
        %343 = vadd.xlane.f32.xlu0 %v342
        %v344 = vpop.xlane.xlu0 %343
        %v345 = vsel %vm317, %v292, 0.0
        %346 = vadd.xlane.f32.xlu0 %v345
        %v347 = vpop.xlane.xlu0 %346
        %v348 = vsel %vm317, %v293, 0.0
        %349 = vadd.xlane.f32.xlu0 %v348
        %v350 = vpop.xlane.xlu0 %349
        %v351 = vsel %vm317, %v294, 0.0
        %352 = vadd.xlane.f32.xlu0 %v351
        %v353 = vpop.xlane.xlu0 %352
        %v354 = vsel %vm317, %v295, 0.0
        %355 = vadd.xlane.f32.xlu0 %v354
        %v356 = vpop.xlane.xlu0 %355
        %v357 = vsel %vm317, %v296, 0.0
        %358 = vadd.xlane.f32.xlu0 %v357
        %v359 = vpop.xlane.xlu0 %358
        %v360 = vsel %vm317, %v297, 0.0
        %361 = vadd.xlane.f32.xlu0 %v360
        %v362 = vpop.xlane.xlu0 %361
        %v363 = vsel %vm317, %v298, 0.0
        %364 = vadd.xlane.f32.xlu0 %v363
        %v365 = vpop.xlane.xlu0 %364
        %v366 = vsel %vm317, %v299, 0.0
        %367 = vadd.xlane.f32.xlu0 %v366
        %v368 = vpop.xlane.xlu0 %367
        %v369 = vsel %vm317, %v300, 0.0
        %370 = vadd.xlane.f32.xlu0 %v369
        %v371 = vpop.xlane.xlu0 %370
        %v372 = vsel %vm317, %v301, 0.0
        %373 = vadd.xlane.f32.xlu0 %v372
        %v374 = vpop.xlane.xlu0 %373
        %v375 = vsel %vm317, %v302, 0.0
        %376 = vadd.xlane.f32.xlu0 %v375
        %v377 = vpop.xlane.xlu0 %376
        %v378 = vsel %vm317, %v303, 0.0
        %379 = vadd.xlane.f32.xlu0 %v378
        %v380 = vpop.xlane.xlu0 %379
        %v381 = vsel %vm317, %v304, 0.0
        %382 = vadd.xlane.f32.xlu0 %v381
        %v383 = vpop.xlane.xlu0 %382
        %v384 = vsel %vm317, %v305, 0.0
        %385 = vadd.xlane.f32.xlu0 %v384
        %v386 = vpop.xlane.xlu0 %385
        %v387 = vsel %vm317, %v306, 0.0
        %388 = vadd.xlane.f32.xlu0 %v387
        %v389 = vpop.xlane.xlu0 %388
        %v390 = vsel %vm317, %v307, 0.0
        %391 = vadd.xlane.f32.xlu0 %v390
        %v392 = vpop.xlane.xlu0 %391
        %v393 = vsel %vm317, %v308, 0.0
        %394 = vadd.xlane.f32.xlu0 %v393
        %v395 = vpop.xlane.xlu0 %394
        %v396 = vsel %vm317, %v309, 0.0
        %397 = vadd.xlane.f32.xlu0 %v396
        %v398 = vpop.xlane.xlu0 %397
        %v399 = vsel %vm317, %v310, 0.0
        %400 = vadd.xlane.f32.xlu0 %v399
        %v401 = vpop.xlane.xlu0 %400
        %v402 = vsel %vm317, %v311, 0.0
        %403 = vadd.xlane.f32.xlu0 %v402
        %v404 = vpop.xlane.xlu0 %403
        %v405 = vsel %vm317, %v312, 0.0
        %406 = vadd.xlane.f32.xlu0 %v405
        %v407 = vpop.xlane.xlu0 %406
        %v408 = vsel %vm317, %v313, 0.0
        %409 = vadd.xlane.f32.xlu0 %v408
        %v410 = vpop.xlane.xlu0 %409
        %v411 = vsel %vm317, %v314, 0.0
        %412 = vadd.xlane.f32.xlu0 %v411
        %v413 = vpop.xlane.xlu0 %412
        %v414 = vrcp.pop 32.0
        %v415 = vmul.f32 %v320, %v414
        %v416 = vmul.f32 %v323, %v414
        %v417 = vmul.f32 %v326, %v414
        %v418 = vmul.f32 %v329, %v414
        %v419 = vmul.f32 %v332, %v414
        %v420 = vmul.f32 %v335, %v414
        %v421 = vmul.f32 %v338, %v414
        %v422 = vmul.f32 %v341, %v414
        %v423 = vmul.f32 %v344, %v414
        %v424 = vmul.f32 %v347, %v414
        %v425 = vmul.f32 %v350, %v414
        %v426 = vmul.f32 %v353, %v414
        %v427 = vmul.f32 %v356, %v414
        %v428 = vmul.f32 %v359, %v414
        %v429 = vmul.f32 %v362, %v414
        %v430 = vmul.f32 %v365, %v414
        %v431 = vmul.f32 %v368, %v414
        %v432 = vmul.f32 %v371, %v414
        %v433 = vmul.f32 %v374, %v414
        %v434 = vmul.f32 %v377, %v414
        %v435 = vmul.f32 %v380, %v414
        %v436 = vmul.f32 %v383, %v414
        %v437 = vmul.f32 %v386, %v414
        %v438 = vmul.f32 %v389, %v414
        %v439 = vmul.f32 %v392, %v414
        %v440 = vmul.f32 %v395, %v414
        %v441 = vmul.f32 %v398, %v414
        %v442 = vmul.f32 %v401, %v414
        %v443 = vmul.f32 %v404, %v414
        %v444 = vmul.f32 %v407, %v414
        %v445 = vmul.f32 %v410, %v414
        %v446 = vmul.f32 %v413, %v414
        %v447 = vsub.f32 %v283, %v415
        %v448 = vsub.f32 %v284, %v416
        %v449 = vsub.f32 %v285, %v417
        %v450 = vsub.f32 %v286, %v418
        %v451 = vsub.f32 %v287, %v419
        %v452 = vsub.f32 %v288, %v420
        %v453 = vsub.f32 %v289, %v421
        %v454 = vsub.f32 %v290, %v422
        %v455 = vsub.f32 %v291, %v423
        %v456 = vsub.f32 %v292, %v424
        %v457 = vsub.f32 %v293, %v425
        %v458 = vsub.f32 %v294, %v426
        %v459 = vsub.f32 %v295, %v427
        %v460 = vsub.f32 %v296, %v428
        %v461 = vsub.f32 %v297, %v429
        %v462 = vsub.f32 %v298, %v430
        %v463 = vsub.f32 %v299, %v431
        %v464 = vsub.f32 %v300, %v432
        %v465 = vsub.f32 %v301, %v433
        %v466 = vsub.f32 %v302, %v434
        %v467 = vsub.f32 %v303, %v435
        %v468 = vsub.f32 %v304, %v436
        %v469 = vsub.f32 %v305, %v437
        %v470 = vsub.f32 %v306, %v438
        %v471 = vsub.f32 %v307, %v439
        %v472 = vsub.f32 %v308, %v440
        %v473 = vsub.f32 %v309, %v441
        %v474 = vsub.f32 %v310, %v442
        %v475 = vsub.f32 %v311, %v443
        %v476 = vsub.f32 %v312, %v444
        %v477 = vsub.f32 %v313, %v445
        %v478 = vsub.f32 %v314, %v446
        %v479 = vmul.f32 %v447, %v447
        %v480 = vmul.f32 %v448, %v448
        %v481 = vmul.f32 %v449, %v449
        %v482 = vmul.f32 %v450, %v450
        %v483 = vmul.f32 %v451, %v451
        %v484 = vmul.f32 %v452, %v452
        %v485 = vmul.f32 %v453, %v453
        %v486 = vmul.f32 %v454, %v454
        %v487 = vmul.f32 %v455, %v455
        %v488 = vmul.f32 %v456, %v456
        %v489 = vmul.f32 %v457, %v457
        %v490 = vmul.f32 %v458, %v458
        %v491 = vmul.f32 %v459, %v459
        %v492 = vmul.f32 %v460, %v460
        %v493 = vmul.f32 %v461, %v461
        %v494 = vmul.f32 %v462, %v462
        %v495 = vmul.f32 %v463, %v463
        %v496 = vmul.f32 %v464, %v464
        %v497 = vmul.f32 %v465, %v465
        %v498 = vmul.f32 %v466, %v466
        %v499 = vmul.f32 %v467, %v467
        %v500 = vmul.f32 %v468, %v468
        %v501 = vmul.f32 %v469, %v469
        %v502 = vmul.f32 %v470, %v470
        %v503 = vmul.f32 %v471, %v471
        %v504 = vmul.f32 %v472, %v472
        %v505 = vmul.f32 %v473, %v473
        %v506 = vmul.f32 %v474, %v474
        %v507 = vmul.f32 %v475, %v475
        %v508 = vmul.f32 %v476, %v476
        %v509 = vmul.f32 %v477, %v477
        %v510 = vmul.f32 %v478, %v478
        %v511 = vsel %vm317, %v479, 0.0
        %512 = vadd.xlane.f32.xlu0 %v511
        %v513 = vpop.xlane.xlu0 %512
        %v514 = vsel %vm317, %v480, 0.0
        %515 = vadd.xlane.f32.xlu0 %v514
        %v516 = vpop.xlane.xlu0 %515
        %v517 = vsel %vm317, %v481, 0.0
        %518 = vadd.xlane.f32.xlu0 %v517
        %v519 = vpop.xlane.xlu0 %518
        %v520 = vsel %vm317, %v482, 0.0
        %521 = vadd.xlane.f32.xlu0 %v520
        %v522 = vpop.xlane.xlu0 %521
        %v523 = vsel %vm317, %v483, 0.0
        %524 = vadd.xlane.f32.xlu0 %v523
        %v525 = vpop.xlane.xlu0 %524
        %v526 = vsel %vm317, %v484, 0.0
        %527 = vadd.xlane.f32.xlu0 %v526
        %v528 = vpop.xlane.xlu0 %527
        %v529 = vsel %vm317, %v485, 0.0
        %530 = vadd.xlane.f32.xlu0 %v529
        %v531 = vpop.xlane.xlu0 %530
        %v532 = vsel %vm317, %v486, 0.0
        %533 = vadd.xlane.f32.xlu0 %v532
        %v534 = vpop.xlane.xlu0 %533
        %v535 = vsel %vm317, %v487, 0.0
        %536 = vadd.xlane.f32.xlu0 %v535
        %v537 = vpop.xlane.xlu0 %536
        %v538 = vsel %vm317, %v488, 0.0
        %539 = vadd.xlane.f32.xlu0 %v538
        %v540 = vpop.xlane.xlu0 %539
        %v541 = vsel %vm317, %v489, 0.0
        %542 = vadd.xlane.f32.xlu0 %v541
        %v543 = vpop.xlane.xlu0 %542
        %v544 = vsel %vm317, %v490, 0.0
        %545 = vadd.xlane.f32.xlu0 %v544
        %v546 = vpop.xlane.xlu0 %545
        %v547 = vsel %vm317, %v491, 0.0
        %548 = vadd.xlane.f32.xlu0 %v547
        %v549 = vpop.xlane.xlu0 %548
        %v550 = vsel %vm317, %v492, 0.0
        %551 = vadd.xlane.f32.xlu0 %v550
        %v552 = vpop.xlane.xlu0 %551
        %v553 = vsel %vm317, %v493, 0.0
        %554 = vadd.xlane.f32.xlu0 %v553
        %v555 = vpop.xlane.xlu0 %554
        %v556 = vsel %vm317, %v494, 0.0
        %557 = vadd.xlane.f32.xlu0 %v556
        %v558 = vpop.xlane.xlu0 %557
        %v559 = vsel %vm317, %v495, 0.0
        %560 = vadd.xlane.f32.xlu0 %v559
        %v561 = vpop.xlane.xlu0 %560
        %v562 = vsel %vm317, %v496, 0.0
        %563 = vadd.xlane.f32.xlu0 %v562
        %v564 = vpop.xlane.xlu0 %563
        %v565 = vsel %vm317, %v497, 0.0
        %566 = vadd.xlane.f32.xlu0 %v565
        %v567 = vpop.xlane.xlu0 %566
        %v568 = vsel %vm317, %v498, 0.0
        %569 = vadd.xlane.f32.xlu0 %v568
        %v570 = vpop.xlane.xlu0 %569
        %v571 = vsel %vm317, %v499, 0.0
        %572 = vadd.xlane.f32.xlu0 %v571
        %v573 = vpop.xlane.xlu0 %572
        %v574 = vsel %vm317, %v500, 0.0
        %575 = vadd.xlane.f32.xlu0 %v574
        %v576 = vpop.xlane.xlu0 %575
        %v577 = vsel %vm317, %v501, 0.0
        %578 = vadd.xlane.f32.xlu0 %v577
        %v579 = vpop.xlane.xlu0 %578
        %v580 = vsel %vm317, %v502, 0.0
        %581 = vadd.xlane.f32.xlu0 %v580
        %v582 = vpop.xlane.xlu0 %581
        %v583 = vsel %vm317, %v503, 0.0
        %584 = vadd.xlane.f32.xlu0 %v583
        %v585 = vpop.xlane.xlu0 %584
        %v586 = vsel %vm317, %v504, 0.0
        %587 = vadd.xlane.f32.xlu0 %v586
        %v588 = vpop.xlane.xlu0 %587
        %v589 = vsel %vm317, %v505, 0.0
        %590 = vadd.xlane.f32.xlu0 %v589
        %v591 = vpop.xlane.xlu0 %590
        %v592 = vsel %vm317, %v506, 0.0
        %593 = vadd.xlane.f32.xlu0 %v592
        %v594 = vpop.xlane.xlu0 %593
        %v595 = vsel %vm317, %v507, 0.0
        %596 = vadd.xlane.f32.xlu0 %v595
        %v597 = vpop.xlane.xlu0 %596
        %v598 = vsel %vm317, %v508, 0.0
        %599 = vadd.xlane.f32.xlu0 %v598
        %v600 = vpop.xlane.xlu0 %599
        %v601 = vsel %vm317, %v509, 0.0
        %602 = vadd.xlane.f32.xlu0 %v601
        %v603 = vpop.xlane.xlu0 %602
        %v604 = vsel %vm317, %v510, 0.0
        %605 = vadd.xlane.f32.xlu0 %v604
        %v606 = vpop.xlane.xlu0 %605
        %v607 = vmul.f32 %v513, %v414
        %v608 = vmul.f32 %v516, %v414
        %v609 = vmul.f32 %v519, %v414
        %v610 = vmul.f32 %v522, %v414
        %v611 = vmul.f32 %v525, %v414
        %v612 = vmul.f32 %v528, %v414
        %v613 = vmul.f32 %v531, %v414
        %v614 = vmul.f32 %v534, %v414
        %v615 = vmul.f32 %v537, %v414
        %v616 = vmul.f32 %v540, %v414
        %v617 = vmul.f32 %v543, %v414
        %v618 = vmul.f32 %v546, %v414
        %v619 = vmul.f32 %v549, %v414
        %v620 = vmul.f32 %v552, %v414
        %v621 = vmul.f32 %v555, %v414
        %v622 = vmul.f32 %v558, %v414
        %v623 = vmul.f32 %v561, %v414
        %v624 = vmul.f32 %v564, %v414
        %v625 = vmul.f32 %v567, %v414
        %v626 = vmul.f32 %v570, %v414
        %v627 = vmul.f32 %v573, %v414
        %v628 = vmul.f32 %v576, %v414
        %v629 = vmul.f32 %v579, %v414
        %v630 = vmul.f32 %v582, %v414
        %v631 = vmul.f32 %v585, %v414
        %v632 = vmul.f32 %v588, %v414
        %v633 = vmul.f32 %v591, %v414
        %v634 = vmul.f32 %v594, %v414
        %v635 = vmul.f32 %v597, %v414
        %v636 = vmul.f32 %v600, %v414
        %v637 = vmul.f32 %v603, %v414
        %v638 = vmul.f32 %v606, %v414
        %v639 = vadd.f32 %v607, 1e-06
        %v640 = vadd.f32 %v608, 1e-06
        %v641 = vadd.f32 %v609, 1e-06
        %v642 = vadd.f32 %v610, 1e-06
        %v643 = vadd.f32 %v611, 1e-06
        %v644 = vadd.f32 %v612, 1e-06
        %v645 = vadd.f32 %v613, 1e-06
        %v646 = vadd.f32 %v614, 1e-06
        %v647 = vadd.f32 %v615, 1e-06
        %v648 = vadd.f32 %v616, 1e-06
        %v649 = vadd.f32 %v617, 1e-06
        %v650 = vadd.f32 %v618, 1e-06
        %v651 = vadd.f32 %v619, 1e-06
        %v652 = vadd.f32 %v620, 1e-06
        %v653 = vadd.f32 %v621, 1e-06
        %v654 = vadd.f32 %v622, 1e-06
        %v655 = vadd.f32 %v623, 1e-06
        %v656 = vadd.f32 %v624, 1e-06
        %v657 = vadd.f32 %v625, 1e-06
        %v658 = vadd.f32 %v626, 1e-06
        %v659 = vadd.f32 %v627, 1e-06
        %v660 = vadd.f32 %v628, 1e-06
        %v661 = vadd.f32 %v629, 1e-06
        %v662 = vadd.f32 %v630, 1e-06
        %v663 = vadd.f32 %v631, 1e-06
        %v664 = vadd.f32 %v632, 1e-06
        %v665 = vadd.f32 %v633, 1e-06
        %v666 = vadd.f32 %v634, 1e-06
        %v667 = vadd.f32 %v635, 1e-06
        %v668 = vadd.f32 %v636, 1e-06
        %v669 = vadd.f32 %v637, 1e-06
        %v670 = vadd.f32 %v638, 1e-06
        %v671 = vrsqrt.pop %v639
        %v672 = vrsqrt.pop %v640
        %v673 = vrsqrt.pop %v641
        %v674 = vrsqrt.pop %v642
        %v675 = vrsqrt.pop %v643
        %v676 = vrsqrt.pop %v644
        %v677 = vrsqrt.pop %v645
        %v678 = vrsqrt.pop %v646
        %v679 = vrsqrt.pop %v647
        %v680 = vrsqrt.pop %v648
        %v681 = vrsqrt.pop %v649
        %v682 = vrsqrt.pop %v650
        %v683 = vrsqrt.pop %v651
        %v684 = vrsqrt.pop %v652
        %v685 = vrsqrt.pop %v653
        %v686 = vrsqrt.pop %v654
        %v687 = vrsqrt.pop %v655
        %v688 = vrsqrt.pop %v656
        %v689 = vrsqrt.pop %v657
        %v690 = vrsqrt.pop %v658
        %v691 = vrsqrt.pop %v659
        %v692 = vrsqrt.pop %v660
        %v693 = vrsqrt.pop %v661
        %v694 = vrsqrt.pop %v662
        %v695 = vrsqrt.pop %v663
        %v696 = vrsqrt.pop %v664
        %v697 = vrsqrt.pop %v665
        %v698 = vrsqrt.pop %v666
        %v699 = vrsqrt.pop %v667
        %v700 = vrsqrt.pop %v668
        %v701 = vrsqrt.pop %v669
        %v702 = vrsqrt.pop %v670
        %v703 = vmul.f32 %v447, %v671
        %v704 = vmul.f32 %v448, %v672
        %v705 = vmul.f32 %v449, %v673
        %v706 = vmul.f32 %v450, %v674
        %v707 = vmul.f32 %v451, %v675
        %v708 = vmul.f32 %v452, %v676
        %v709 = vmul.f32 %v453, %v677
        %v710 = vmul.f32 %v454, %v678
        %v711 = vmul.f32 %v455, %v679
        %v712 = vmul.f32 %v456, %v680
        %v713 = vmul.f32 %v457, %v681
        %v714 = vmul.f32 %v458, %v682
        %v715 = vmul.f32 %v459, %v683
        %v716 = vmul.f32 %v460, %v684
        %v717 = vmul.f32 %v461, %v685
        %v718 = vmul.f32 %v462, %v686
        %v719 = vmul.f32 %v463, %v687
        %v720 = vmul.f32 %v464, %v688
        %v721 = vmul.f32 %v465, %v689
        %v722 = vmul.f32 %v466, %v690
        %v723 = vmul.f32 %v467, %v691
        %v724 = vmul.f32 %v468, %v692
        %v725 = vmul.f32 %v469, %v693
        %v726 = vmul.f32 %v470, %v694
        %v727 = vmul.f32 %v471, %v695
        %v728 = vmul.f32 %v472, %v696
        %v729 = vmul.f32 %v473, %v697
        %v730 = vmul.f32 %v474, %v698
        %v731 = vmul.f32 %v475, %v699
        %v732 = vmul.f32 %v476, %v700
        %v733 = vmul.f32 %v477, %v701
        %v734 = vmul.f32 %v478, %v702
        %v736 = vlaneseq
        %v737 = vshrl.u32 %v736, 7
        %v738 = vsub.s32 0, %v737
        %v739 = vrot.slane %v316, %v738
        %v741 = vmul.f32 %v703, %v739
        %v742 = vmul.f32 %v704, %v739
        %v743 = vmul.f32 %v705, %v739
        %v744 = vmul.f32 %v706, %v739
        %v745 = vmul.f32 %v707, %v739
        %v746 = vmul.f32 %v708, %v739
        %v747 = vmul.f32 %v709, %v739
        %v748 = vmul.f32 %v710, %v739
        %v749 = vmul.f32 %v711, %v739
        %v750 = vmul.f32 %v712, %v739
        %v751 = vmul.f32 %v713, %v739
        %v752 = vmul.f32 %v714, %v739
        %v753 = vmul.f32 %v715, %v739
        %v754 = vmul.f32 %v716, %v739
        %v755 = vmul.f32 %v717, %v739
        %v756 = vmul.f32 %v718, %v739
        %v757 = vmul.f32 %v719, %v739
        %v758 = vmul.f32 %v720, %v739
        %v759 = vmul.f32 %v721, %v739
        %v760 = vmul.f32 %v722, %v739
        %v761 = vmul.f32 %v723, %v739
        %v762 = vmul.f32 %v724, %v739
        %v763 = vmul.f32 %v725, %v739
        %v764 = vmul.f32 %v726, %v739
        %v765 = vmul.f32 %v727, %v739
        %v766 = vmul.f32 %v728, %v739
        %v767 = vmul.f32 %v729, %v739
        %v768 = vmul.f32 %v730, %v739
        %v769 = vmul.f32 %v731, %v739
        %v770 = vmul.f32 %v732, %v739
        %v771 = vmul.f32 %v733, %v739
        %v772 = vmul.f32 %v734, %v739
        %v774 = vlaneseq
        %v775 = vshrl.u32 %v774, 7
        %v776 = vsub.s32 0, %v775
        %v777 = vrot.slane %v315, %v776
        %v779 = vadd.f32 %v741, %v777
        %v780 = vadd.f32 %v742, %v777
        %v781 = vadd.f32 %v743, %v777
        %v782 = vadd.f32 %v744, %v777
        %v783 = vadd.f32 %v745, %v777
        %v784 = vadd.f32 %v746, %v777
        %v785 = vadd.f32 %v747, %v777
        %v786 = vadd.f32 %v748, %v777
        %v787 = vadd.f32 %v749, %v777
        %v788 = vadd.f32 %v750, %v777
        %v789 = vadd.f32 %v751, %v777
        %v790 = vadd.f32 %v752, %v777
        %v791 = vadd.f32 %v753, %v777
        %v792 = vadd.f32 %v754, %v777
        %v793 = vadd.f32 %v755, %v777
        %v794 = vadd.f32 %v756, %v777
        %v795 = vadd.f32 %v757, %v777
        %v796 = vadd.f32 %v758, %v777
        %v797 = vadd.f32 %v759, %v777
        %v798 = vadd.f32 %v760, %v777
        %v799 = vadd.f32 %v761, %v777
        %v800 = vadd.f32 %v762, %v777
        %v801 = vadd.f32 %v763, %v777
        %v802 = vadd.f32 %v764, %v777
        %v803 = vadd.f32 %v765, %v777
        %v804 = vadd.f32 %v766, %v777
        %v805 = vadd.f32 %v767, %v777
        %v806 = vadd.f32 %v768, %v777
        %v807 = vadd.f32 %v769, %v777
        %v808 = vadd.f32 %v770, %v777
        %v809 = vadd.f32 %v771, %v777
        %v810 = vadd.f32 %v772, %v777
        %v811 = vpack.c.bf16 %v780, %v779
        %v812 = vpack.c.bf16 %v782, %v781
        %v813 = vpack.c.bf16 %v784, %v783
        %v814 = vpack.c.bf16 %v786, %v785
        %v815 = vpack.c.bf16 %v788, %v787
        %v816 = vpack.c.bf16 %v790, %v789
        %v817 = vpack.c.bf16 %v792, %v791
        %v818 = vpack.c.bf16 %v794, %v793
        %v819 = vpack.c.bf16 %v796, %v795
        %v820 = vpack.c.bf16 %v798, %v797
        %v821 = vpack.c.bf16 %v800, %v799
        %v822 = vpack.c.bf16 %v802, %v801
        %v823 = vpack.c.bf16 %v804, %v803
        %v824 = vpack.c.bf16 %v806, %v805
        %v825 = vpack.c.bf16 %v808, %v807
        %v826 = vpack.c.bf16 %v810, %v809
        %v827 = vld [vmem:[%s3] sm:$0xf]
        %v828 = vld [vmem:[%s3 + $0x4] sm:$0xf]
        %v829 = vld [vmem:[%s3 + $0x8] sm:$0xf]
        %v830 = vld [vmem:[%s3 + $0xc] sm:$0xf]
        %v831 = vld [vmem:[%s4] sm:$0x1]
        %v833 = vlaneseq
        %v834 = vshrl.u32 %v833, 7
        %v835 = vsub.s32 0, %v834
        %v836 = vrot.slane %v831, %v835
        %v842 = vunpack.c.l.b16 %v827
        %v843 = vunpack.c.l.b16 %v828
        %v844 = vunpack.c.l.b16 %v829
        %v845 = vunpack.c.l.b16 %v830
        %v846 = vpack.c.b16 %v843, %v842
        %v847 = vpack.c.b16 %v845, %v844
        %v851 = vsel %vm317, %v811, 0
        %v854 = vsel %vm317, %v812, 0
        %v857 = vsel %vm317, %v813, 0
        %v860 = vsel %vm317, %v814, 0
        %v863 = vsel %vm317, %v815, 0
        %v866 = vsel %vm317, %v816, 0
        %v869 = vsel %vm317, %v817, 0
        %v872 = vsel %vm317, %v818, 0
        %v875 = vsel %vm317, %v819, 0
        %v878 = vsel %vm317, %v820, 0
        %v881 = vsel %vm317, %v821, 0
        %v884 = vsel %vm317, %v822, 0
        %v887 = vsel %vm317, %v823, 0
        %v890 = vsel %vm317, %v824, 0
        %v893 = vsel %vm317, %v825, 0
        %v896 = vsel %vm317, %v826, 0
        %898 = vmatprep.subr.bf16.mxu0 0
        %899 = vmatpush1.bf16.msra.mxu0 %v846
        %900 = vmatprep.subr.bf16.mxu0 0
        %901 = vmatpush1.bf16.msra.mxu0 %v847
        %902 = vmatprep.subr.bf16.mxu0 0
        %903 = vmatpush1.bf16.msra.mxu0 0
        %904 = vmatprep.subr.bf16.mxu0 0
        %905 = vmatpush1.bf16.msra.mxu0 0
        %906 = vmatprep.subr.bf16.mxu0 0
        %907 = vmatpush1.bf16.msra.mxu0 0
        %908 = vmatprep.subr.bf16.mxu0 0
        %909 = vmatpush1.bf16.msra.mxu0 0
        %910 = vmatprep.subr.bf16.mxu0 0
        %911 = vmatpush1.bf16.msra.mxu0 0
        %912 = vmatprep.subr.bf16.mxu0 0
        %913 = vmatpush1.bf16.msra.mxu0 0
        %914 = vmatprep.subr.bf16.mxu0 0
        %915 = vmatpush1.bf16.msra.mxu0 0
        %916 = vmatprep.subr.bf16.mxu0 0
        %917 = vmatpush1.bf16.msra.mxu0 0
        %918 = vmatprep.subr.bf16.mxu0 0
        %919 = vmatpush1.bf16.msra.mxu0 0
        %920 = vmatprep.subr.bf16.mxu0 0
        %921 = vmatpush1.bf16.msra.mxu0 0
        %922 = vmatprep.subr.bf16.mxu0 0
        %923 = vmatpush1.bf16.msra.mxu0 0
        %924 = vmatprep.subr.bf16.mxu0 0
        %925 = vmatpush1.bf16.msra.mxu0 0
        %926 = vmatprep.subr.bf16.mxu0 0
        %927 = vmatpush1.bf16.msra.mxu0 0
        %928 = vmatprep.subr.bf16.mxu0 0
        %929 = vmatpush1.bf16.msra.mxu0 0
        %930 = vmatprep.mubr.bf16.mxu0 0
        %931 = vmatmul.mubr.bf16.gmra.mrb[0].mxu0 %v851
        %v932 = vpop.f32.mrb[0].mxu0
        %v933 = vadd.f32 %v836, %v932
        %v934 = vpop.f32.mrb[0].mxu0
        %v935 = vpop.f32.mrb[0].mxu0
        %v936 = vadd.f32 %v836, %v935
        %v937 = vpop.f32.mrb[0].mxu0
        %938 = vmatprep.mubr.bf16.mxu0 0
        %939 = vmatmul.mubr.bf16.gmra.mrb[0].mxu0 %v854
        %v940 = vpop.f32.mrb[0].mxu0
        %v941 = vadd.f32 %v836, %v940
        %v942 = vpop.f32.mrb[0].mxu0
        %v943 = vpop.f32.mrb[0].mxu0
        %v944 = vadd.f32 %v836, %v943
        %v945 = vpop.f32.mrb[0].mxu0
        %946 = vmatprep.mubr.bf16.mxu0 0
        %947 = vmatmul.mubr.bf16.gmra.mrb[0].mxu0 %v857
        %v948 = vpop.f32.mrb[0].mxu0
        %v949 = vadd.f32 %v836, %v948
        %v950 = vpop.f32.mrb[0].mxu0
        %v951 = vpop.f32.mrb[0].mxu0
        %v952 = vadd.f32 %v836, %v951
        %v953 = vpop.f32.mrb[0].mxu0
        %954 = vmatprep.mubr.bf16.mxu0 0
        %955 = vmatmul.mubr.bf16.gmra.mrb[0].mxu0 %v860
        %v956 = vpop.f32.mrb[0].mxu0
        %v957 = vadd.f32 %v836, %v956
        %v958 = vpop.f32.mrb[0].mxu0
        %v959 = vpop.f32.mrb[0].mxu0
        %v960 = vadd.f32 %v836, %v959
        %v961 = vpop.f32.mrb[0].mxu0
        %962 = vmatprep.mubr.bf16.mxu0 0
        %963 = vmatmul.mubr.bf16.gmra.mrb[0].mxu0 %v863
        %v964 = vpop.f32.mrb[0].mxu0
        %v965 = vadd.f32 %v836, %v964
        %v966 = vpop.f32.mrb[0].mxu0
        %v967 = vpop.f32.mrb[0].mxu0
        %v968 = vadd.f32 %v836, %v967
        %v969 = vpop.f32.mrb[0].mxu0
        %970 = vmatprep.mubr.bf16.mxu0 0
        %971 = vmatmul.mubr.bf16.gmra.mrb[0].mxu0 %v866
        %v972 = vpop.f32.mrb[0].mxu0
        %v973 = vadd.f32 %v836, %v972
        %v974 = vpop.f32.mrb[0].mxu0
        %v975 = vpop.f32.mrb[0].mxu0
        %v976 = vadd.f32 %v836, %v975
        %v977 = vpop.f32.mrb[0].mxu0
        %978 = vmatprep.mubr.bf16.mxu0 0
        %979 = vmatmul.mubr.bf16.gmra.mrb[0].mxu0 %v869
        %v980 = vpop.f32.mrb[0].mxu0
        %v981 = vadd.f32 %v836, %v980
        %v982 = vpop.f32.mrb[0].mxu0
        %v983 = vpop.f32.mrb[0].mxu0
        %v984 = vadd.f32 %v836, %v983
        %v985 = vpop.f32.mrb[0].mxu0
        %986 = vmatprep.mubr.bf16.mxu0 0
        %987 = vmatmul.mubr.bf16.gmra.mrb[0].mxu0 %v872
        %v988 = vpop.f32.mrb[0].mxu0
        %v989 = vadd.f32 %v836, %v988
        %v990 = vpop.f32.mrb[0].mxu0
        %v991 = vpop.f32.mrb[0].mxu0
        %v992 = vadd.f32 %v836, %v991
        %v993 = vpop.f32.mrb[0].mxu0
        %994 = vmatprep.mubr.bf16.mxu0 0
        %995 = vmatmul.mubr.bf16.gmra.mrb[0].mxu0 %v875
        %v996 = vpop.f32.mrb[0].mxu0
        %v997 = vadd.f32 %v836, %v996
        %v998 = vpop.f32.mrb[0].mxu0
        %v999 = vpop.f32.mrb[0].mxu0
        %v1000 = vadd.f32 %v836, %v999
        %v1001 = vpop.f32.mrb[0].mxu0
        %1002 = vmatprep.mubr.bf16.mxu0 0
        %1003 = vmatmul.mubr.bf16.gmra.mrb[0].mxu0 %v878
        %v1004 = vpop.f32.mrb[0].mxu0
        %v1005 = vadd.f32 %v836, %v1004
        %v1006 = vpop.f32.mrb[0].mxu0
        %v1007 = vpop.f32.mrb[0].mxu0
        %v1008 = vadd.f32 %v836, %v1007
        %v1009 = vpop.f32.mrb[0].mxu0
        %1010 = vmatprep.mubr.bf16.mxu0 0
        %1011 = vmatmul.mubr.bf16.gmra.mrb[0].mxu0 %v881
        %v1012 = vpop.f32.mrb[0].mxu0
        %v1013 = vadd.f32 %v836, %v1012
        %v1014 = vpop.f32.mrb[0].mxu0
        %v1015 = vpop.f32.mrb[0].mxu0
        %v1016 = vadd.f32 %v836, %v1015
        %v1017 = vpop.f32.mrb[0].mxu0
        %1018 = vmatprep.mubr.bf16.mxu0 0
        %1019 = vmatmul.mubr.bf16.gmra.mrb[0].mxu0 %v884
        %v1020 = vpop.f32.mrb[0].mxu0
        %v1021 = vadd.f32 %v836, %v1020
        %v1022 = vpop.f32.mrb[0].mxu0
        %v1023 = vpop.f32.mrb[0].mxu0
        %v1024 = vadd.f32 %v836, %v1023
        %v1025 = vpop.f32.mrb[0].mxu0
        %1026 = vmatprep.mubr.bf16.mxu0 0
        %1027 = vmatmul.mubr.bf16.gmra.mrb[0].mxu0 %v887
        %v1028 = vpop.f32.mrb[0].mxu0
        %v1029 = vadd.f32 %v836, %v1028
        %v1030 = vpop.f32.mrb[0].mxu0
        %v1031 = vpop.f32.mrb[0].mxu0
        %v1032 = vadd.f32 %v836, %v1031
        %v1033 = vpop.f32.mrb[0].mxu0
        %1034 = vmatprep.mubr.bf16.mxu0 0
        %1035 = vmatmul.mubr.bf16.gmra.mrb[0].mxu0 %v890
        %v1036 = vpop.f32.mrb[0].mxu0
        %v1037 = vadd.f32 %v836, %v1036
        %v1038 = vpop.f32.mrb[0].mxu0
        %v1039 = vpop.f32.mrb[0].mxu0
        %v1040 = vadd.f32 %v836, %v1039
        %v1041 = vpop.f32.mrb[0].mxu0
        %1042 = vmatprep.mubr.bf16.mxu0 0
        %1043 = vmatmul.mubr.bf16.gmra.mrb[0].mxu0 %v893
        %v1044 = vpop.f32.mrb[0].mxu0
        %v1045 = vadd.f32 %v836, %v1044
        %v1046 = vpop.f32.mrb[0].mxu0
        %v1047 = vpop.f32.mrb[0].mxu0
        %v1048 = vadd.f32 %v836, %v1047
        %v1049 = vpop.f32.mrb[0].mxu0
        %1050 = vmatprep.mubr.bf16.mxu0 0
        %1051 = vmatmul.mubr.bf16.gmra.mrb[0].mxu0 %v896
        %v1052 = vpop.f32.mrb[0].mxu0
        %v1053 = vadd.f32 %v836, %v1052
        %v1054 = vpop.f32.mrb[0].mxu0
        %v1055 = vpop.f32.mrb[0].mxu0
        %v1056 = vadd.f32 %v836, %v1055
        %v1057 = vpop.f32.mrb[0].mxu0
        %1058 = vdwg.mxu0
        %1059 = vst [vmem:[%s264] sm:$0xff] %v933
        %1060 = vst [vmem:[%s264 + $0x8] sm:$0xff] %v936
        %1061 = vst [vmem:[%s264 + $0x10] sm:$0xff] %v941
        %1062 = vst [vmem:[%s264 + $0x18] sm:$0xff] %v944
        %1063 = vst [vmem:[%s264 + $0x20] sm:$0xff] %v949
        %1064 = vst [vmem:[%s264 + $0x28] sm:$0xff] %v952
        %1065 = vst [vmem:[%s264 + $0x30] sm:$0xff] %v957
        %1066 = vst [vmem:[%s264 + $0x38] sm:$0xff] %v960
        %1067 = vst [vmem:[%s264 + $0x40] sm:$0xff] %v965
        %1068 = vst [vmem:[%s264 + $0x48] sm:$0xff] %v968
        %1069 = vst [vmem:[%s264 + $0x50] sm:$0xff] %v973
        %1070 = vst [vmem:[%s264 + $0x58] sm:$0xff] %v976
        %1071 = vst [vmem:[%s264 + $0x60] sm:$0xff] %v981
        %1072 = vst [vmem:[%s264 + $0x68] sm:$0xff] %v984
        %1073 = vst [vmem:[%s264 + $0x70] sm:$0xff] %v989
        %1074 = vst [vmem:[%s264 + $0x78] sm:$0xff] %v992
        %1075 = vst [vmem:[%s264 + $0x80] sm:$0xff] %v997
        %1076 = vst [vmem:[%s264 + $0x88] sm:$0xff] %v1000
        %1077 = vst [vmem:[%s264 + $0x90] sm:$0xff] %v1005
        %1078 = vst [vmem:[%s264 + $0x98] sm:$0xff] %v1008
        %1079 = vst [vmem:[%s264 + $0xa0] sm:$0xff] %v1013
        %1080 = vst [vmem:[%s264 + $0xa8] sm:$0xff] %v1016
        %1081 = vst [vmem:[%s264 + $0xb0] sm:$0xff] %v1021
        %1082 = vst [vmem:[%s264 + $0xb8] sm:$0xff] %v1024
        %1083 = vst [vmem:[%s264 + $0xc0] sm:$0xff] %v1029
        %1084 = vst [vmem:[%s264 + $0xc8] sm:$0xff] %v1032
        %1085 = vst [vmem:[%s264 + $0xd0] sm:$0xff] %v1037
        %1086 = vst [vmem:[%s264 + $0xd8] sm:$0xff] %v1040
        %1087 = vst [vmem:[%s264 + $0xe0] sm:$0xff] %v1045
        %1088 = vst [vmem:[%s264 + $0xe8] sm:$0xff] %v1048
        %1089 = vst [vmem:[%s264 + $0xf0] sm:$0xff] %v1053
        %1090 = vst [vmem:[%s264 + $0xf8] sm:$0xff] %v1056
        %s1091 = sand.u32 %s163, 1
        %s1092 = scalar_lea.sflag [#allocation3], %s1091
        %s1093 = sand.u32 %s163, 1
        %s1094 = smul.addr %s1093, 256
        %s1095 = scalar_lea.vmem [#allocation2], %s1094
        // Predicated region
        $region41: #{tpu_custom_call.1} parent=39 // pred_check
          %p1096 = pneg %p173
        $region42: #{tpu_custom_call.1} parent=39 // pred_check_branch
          %1098 = sbr.rel (%p1096) target = $region44
        $region43: #{tpu_custom_call.1} parent=39 // pred_region
          %s1099 = smul.u32 32, %s23
          %s1101 = ssub.s32 4096, 4096
          %1102 = vsyncadd %s1092, %s1101
          %s1103 = smul.addr %s24, 32
          %s1104 = sadd.s32 %s1099, %s1103
          %s1105 = smul.addr %s1104, 128
          %s1106 = scalar_lea.hbm %s5, %s1105
          %s1107 = sshll.u32 %s1095, 4
          %s1108 = int_to_ptr.vmem [resolvable:$true] %s1107
          %1113 = dma.vmem_to_hbm [thread:$0]  %s1108, 4096, %s1106, %s1092, 128, 128, 8
        $region44: #{tpu_custom_call.1} parent=39 // pred_fallthru
          _
      $region40: #{tpu_custom_call.1} parent=5 // pred_fallthru
        _
      %p1114 = scmp.le.s32.totalorder 2, %s14
      // Predicated region
      $region45: #{tpu_custom_call.1} parent=5 // pred_check
        %p1115 = pneg %p1114
      $region46: #{tpu_custom_call.1} parent=5 // pred_check_branch
        %1117 = sbr.rel (%p1115) target = $region48
      $region47: #{tpu_custom_call.1} parent=5 // pred_region
        %s1118 = ssub.s32 %s14, 2
        // Predicated region
        $region49: #{tpu_custom_call.1} parent=47 // pred_check
          %p1119 = pneg %p179
        $region50: #{tpu_custom_call.1} parent=47 // pred_check_branch
          %1121 = sbr.rel (%p1119) target = $region52
        $region51: #{tpu_custom_call.1} parent=47 // pred_region
          %s1122 = sand.u32 %s164, 1
          %s1123 = scalar_lea.sflag [#allocation3], %s1122
          %s1124 = sand.u32 %s164, 1
          %s1125 = smul.addr %s1124, 256
          %s1126 = scalar_lea.vmem [#allocation2], %s1125
          %1127 = dma.done %s1123, 4096
        $region52: #{tpu_custom_call.1} parent=47 // pred_fallthru
          _
      $region48: #{tpu_custom_call.1} parent=5 // pred_fallthru
        _
    $region6: #{tpu_custom_call.1} parent=1 // loop_footer
      %s18 = sadd.s32 1, %s14
    $region7: #{tpu_custom_call.1} parent=1 // loop_footer_branch
      %13 = sbr.rel target = $region3
    $region8: #{tpu_custom_call.1} parent=1 // loop_exit
      _
    %1128 = vsyncpa [#allocation3], 1
    %s1129 = scalar_lea.sflag [#allocation3], 1
    %1130 = vsyncpa %s1129, 1

</llo_original>
